<compile_context>
chip_gen: v6e
topology: v6e:2x2x1
jax: 0.10.0
libtpu: 0.0.40
codegen_flags: <defaults>
</compile_context>

<pallas_src>
import math
import functools

import jax
import jax.numpy as jnp
from jax.experimental import pallas as pl
from jax.experimental.pallas import tpu as pltpu


def _round_up(x, m):
    return (x + m - 1) // m * m


# ------------- single-pass kernel (whole problem resident in VMEM) ----------
def _fused_small_kernel(patches_ref, wt_ref, out_ref, *, n, eps):
    """Y = P @ W once; per-channel stats + normalization fully in-kernel."""
    y = jnp.dot(patches_ref[...], wt_ref[...],
                preferred_element_type=jnp.float32)           # [Mp, Cp] f32
    ch_sum = jnp.sum(y, axis=0, keepdims=True)                # [1, Cp]
    ch_sumsq = jnp.sum(y * y, axis=0, keepdims=True)          # [1, Cp]
    mean = ch_sum * (1.0 / n)
    var = jnp.maximum((ch_sumsq - ch_sum * mean) * (1.0 / (n - 1.0)), 0.0)
    inv_denom = 1.0 / (jnp.sqrt(var) + eps)                   # exact, tiny [1,Cp]
    out_ref[...] = (y - mean) * inv_denom


# ------------- two-pass tiled kernels (general / large M) -------------------
def _conv_stats_kernel(patches_ref, wt_ref, stats_ref):
    """Pass 1: accumulate per-channel sum and sum-of-squares of Y = P @ W."""

    @pl.when(pl.program_id(0) == 0)
    def _init():
        stats_ref[...] = jnp.zeros_like(stats_ref)

    y = jnp.dot(patches_ref[...], wt_ref[...],
                preferred_element_type=jnp.float32)           # [TM, Cp] f32
    tm, cp = y.shape
    y3 = y.reshape(tm // 8, 8, cp)
    # Sublane-aligned partial reduction (pure VPU adds); the final cross-sublane
    # reduce of the 8 rows happens once, outside the kernel.
    stats_ref[0, :, :] += jnp.sum(y3, axis=0)                 # per-channel sum
    stats_ref[1, :, :] += jnp.sum(y3 * y3, axis=0)            # per-channel sumsq


def _conv_norm_kernel(patches_ref, wt_ref, scale_ref, shift_ref, out_ref):
    """Pass 2: Y = P @ W, then per-channel affine normalization (fma)."""
    y = jnp.dot(patches_ref[...], wt_ref[...],
                preferred_element_type=jnp.float32)           # [TM, Cp] f32
    out_ref[...] = y * scale_ref[...] + shift_ref[...]


def _im2col(x, k):
    # x: [B, Cin, H, W] -> patches [B*Ho*Wo, Cin*K*K]
    # (ci-major, (di,dj)-minor: matches conv_weight.reshape(Cout, Cin*K*K)).
    b, cin, h, w = x.shape
    ho, wo = h - k + 1, w - k + 1
    cols = []
    for di in range(k):
        for dj in range(k):
            cols.append(x[:, :, di:di + ho, dj:dj + wo])      # [B, Cin, Ho, Wo]
    patches = jnp.stack(cols, axis=2)                         # [B, Cin, K*K, Ho, Wo]
    patches = patches.transpose(0, 3, 4, 1, 2)                # [B, Ho, Wo, Cin, K*K]
    return patches.reshape(b * ho * wo, cin * k * k), (b, ho, wo)


@functools.partial(jax.jit, static_argnames=("eps", "tm", "force_two_pass"))
def fused_conv_bn(x, conv_weight, eps=1e-3, tm=512, force_two_pass=False):
    """x: [B, Cin, H, W] (NCHW) f32, conv_weight: [Cout, Cin, K, K]. Returns NCHW f32."""
    cout, cin, k, _ = conv_weight.shape
    b = x.shape[0]

    # --- XLA glue: im2col, bf16 cast, padding to tile-friendly shapes --------
    patches, (_, ho, wo) = _im2col(x.astype(jnp.bfloat16), k)   # [M, Kd] bf16
    m, kdim = patches.shape

    cout_p = _round_up(cout, 128)         # lane-dense output channels
    kdim_p = _round_up(kdim, 8)           # sublane-friendly contraction dim

    wt = jnp.pad(
        conv_weight.reshape(cout, kdim).T.astype(jnp.bfloat16),
        ((0, kdim_p - kdim), (0, cout_p - cout)))               # [Kd_p, Cp] bf16

    # --- Path selection: single fused pass if everything fits in VMEM -------
    m8 = _round_up(m, 8)
    vmem_est = (2 * (m8 * kdim_p * 2 + kdim_p * cout_p * 2 + m8 * cout_p * 4)
                + m8 * cout_p * 4)        # double-buffered blocks + y interm.
    use_fused = (not force_two_pass) and vmem_est <= 12 * 1024 * 1024

    if use_fused:
        m_pad = m8
        patches_p = jnp.pad(patches, ((0, m_pad - m), (0, kdim_p - kdim)))
        out_p = pl.pallas_call(
            functools.partial(_fused_small_kernel, n=float(m), eps=eps),
            out_shape=jax.ShapeDtypeStruct((m_pad, cout_p), jnp.float32),
            grid_spec=pltpu.PrefetchScalarGridSpec(
                num_scalar_prefetch=0,
                grid=(1,),
                in_specs=[
                    pl.BlockSpec((m_pad, kdim_p), lambda i: (0, 0)),
                    pl.BlockSpec((kdim_p, cout_p), lambda i: (0, 0)),
                ],
                out_specs=pl.BlockSpec((m_pad, cout_p), lambda i: (0, 0)),
            ),
            compiler_params=pltpu.CompilerParams(
                dimension_semantics=("arbitrary",),
                vmem_limit_bytes=32 * 1024 * 1024),
            cost_estimate=pl.CostEstimate(
                flops=2 * m_pad * kdim_p * cout_p + 4 * m_pad * cout_p,
                transcendentals=cout_p,
                bytes_accessed=m_pad * kdim_p * 2 + kdim_p * cout_p * 2
                               + m_pad * cout_p * 4),
        )(patches_p, wt)
    else:
        tm = _round_up(max(8, min(tm, m)), 8)   # M tile (rows), multiple of 8
        m_pad = _round_up(m, tm)
        n_tiles = m_pad // tm

        patches_p = jnp.pad(patches, ((0, m_pad - m), (0, kdim_p - kdim)))

        bytes_in = patches_p.size * 2 + wt.size * 2
        mm_flops = 2 * m_pad * kdim_p * cout_p

        # -------------- Pass 1: per-channel sum / sum-of-squares -------------
        stats = pl.pallas_call(
            _conv_stats_kernel,
            out_shape=jax.ShapeDtypeStruct((2, 8, cout_p), jnp.float32),
            grid_spec=pltpu.PrefetchScalarGridSpec(
                num_scalar_prefetch=0,
                grid=(n_tiles,),
                in_specs=[
                    pl.BlockSpec((tm, kdim_p), lambda i: (i, 0)),
                    pl.BlockSpec((kdim_p, cout_p), lambda i: (0, 0)),
                ],
                out_specs=pl.BlockSpec((2, 8, cout_p), lambda i: (0, 0, 0)),
            ),
            compiler_params=pltpu.CompilerParams(
                dimension_semantics=("arbitrary",),        # accumulation axis
                vmem_limit_bytes=32 * 1024 * 1024),
            cost_estimate=pl.CostEstimate(
                flops=mm_flops, transcendentals=0,
                bytes_accessed=bytes_in + 2 * 8 * cout_p * 4),
        )(patches_p, wt)

        # -- Finalize statistics (tiny per-channel vectors; plain-JAX glue) ---
        n = float(m)                                         # true N = B*Ho*Wo
        ch_sum = stats[0].sum(axis=0)                        # [Cp]
        ch_sumsq = stats[1].sum(axis=0)                      # [Cp]
        mean = ch_sum / n
        var = jnp.maximum((ch_sumsq - ch_sum * mean) / (n - 1.0), 0.0)  # unbiased
        inv_denom = 1.0 / (jnp.sqrt(var) + eps)
        scale = inv_denom.reshape(1, cout_p)
        shift = (-mean * inv_denom).reshape(1, cout_p)

        # --------------------------- Pass 2: normalize -----------------------
        out_p = pl.pallas_call(
            _conv_norm_kernel,
            out_shape=jax.ShapeDtypeStruct((m_pad, cout_p), jnp.float32),
            grid_spec=pltpu.PrefetchScalarGridSpec(
                num_scalar_prefetch=0,
                grid=(n_tiles,),
                in_specs=[
                    pl.BlockSpec((tm, kdim_p), lambda i: (i, 0)),
                    pl.BlockSpec((kdim_p, cout_p), lambda i: (0, 0)),
                    pl.BlockSpec((1, cout_p), lambda i: (0, 0)),
                    pl.BlockSpec((1, cout_p), lambda i: (0, 0)),
                ],
                out_specs=pl.BlockSpec((tm, cout_p), lambda i: (i, 0)),
            ),
            compiler_params=pltpu.CompilerParams(
                dimension_semantics=("parallel",),         # independent M tiles
                vmem_limit_bytes=32 * 1024 * 1024),
            cost_estimate=pl.CostEstimate(
                flops=mm_flops + 2 * m_pad * cout_p, transcendentals=0,
                bytes_accessed=bytes_in + m_pad * cout_p * 4),
        )(patches_p, wt, scale, shift)

    # [M, Cp] -> [B, Ho, Wo, Cout] -> NCHW (XLA glue).
    return out_p[:m, :cout].reshape(b, ho, wo, cout).transpose(0, 3, 1, 2)


def _reference(x, w, eps=1e-3):
    # Pure-JAX f32 reference mirroring the PyTorch forward exactly.
    y = jax.lax.conv_general_dilated(
        x, w, window_strides=(1, 1), padding="VALID",
        dimension_numbers=("NCHW", "OIHW", "NCHW"))
    n = y.size / y.shape[1]
    mean = y.sum(axis=(0, 2, 3)) / n
    var = ((y - mean[None, :, None, None]) ** 2).sum(axis=(0, 2, 3)) / (n - 1.0)
    denom = jnp.sqrt(var) + eps
    return (y - mean[None, :, None, None]) / denom[None, :, None, None]


if __name__ == "__main__":
    key = jax.random.PRNGKey(0)
    k_x, k_w = jax.random.split(key)

    B, Cin, H, W = 2, 3, 16, 16
    Cout, K = 5, 3
    eps = 1e-3

    x = jax.random.uniform(k_x, (B, Cin, H, W), dtype=jnp.float32)

    # kaiming_uniform_(a=sqrt(5)) -> Uniform(-1/sqrt(fan_in), 1/sqrt(fan_in))
    fan_in = Cin * K * K
    bound = 1.0 / math.sqrt(fan_in)
    w = jax.random.uniform(k_w, (Cout, Cin, K, K), dtype=jnp.float32,
                           minval=-bound, maxval=bound)

    ref = _reference(x, w, eps=eps)

    # Fast single-pass path (auto-selected for this small size).
    out = fused_conv_bn(x, w, eps=eps)
    out = jax.block_until_ready(out)
    assert out.shape == (B, Cout, H - K + 1, W - K + 1)
    max_err = float(jnp.max(jnp.abs(out - ref)))
    # Tolerance accounts for bf16 MXU operands (f32 accumulation) vs f32 ref.
    assert jnp.allclose(out, ref, atol=2e-2, rtol=2e-2), (
        f"fused path mismatch vs reference, max abs err={max_err}")

    # General tiled path: tm=128 so the toy size (M = 2*14*14 = 392 -> padded
    # 512) exercises the multi-tile grid and cross-tile stats accumulation.
    out2 = fused_conv_bn(x, w, eps=eps, tm=128, force_two_pass=True)
    out2 = jax.block_until_ready(out2)
    max_err2 = float(jnp.max(jnp.abs(out2 - ref)))
    assert jnp.allclose(out2, ref, atol=2e-2, rtol=2e-2), (
        f"two-pass path mismatch vs reference, max abs err={max_err2}")

    print("KERNEL_OK")
</pallas_src>

<mosaic_0001>
module attributes {stable_mosaic.version = 11 : i64} {
  func.func @_fused_small_kernel(%arg0: i32, %arg1: memref<392x32xbf16, #tpu.memory_space<vmem>>, %arg2: memref<32x128xbf16, #tpu.memory_space<vmem>>, %arg3: memref<392x128xf32, #tpu.memory_space<vmem>>) attributes {dimension_semantics = [#tpu.dimension_semantics<arbitrary>], iteration_bounds = array<i64: 1>, scalar_prefetch = 0 : i64, scratch_operands = 0 : i64, tpu.core_type = #tpu.core_type<tc>, window_params = [{pipeline_mode = #tpu.pipeline_mode<synchronous>, transform_indices = @transform_0, window_bounds = array<i64: 392, 32>}, {pipeline_mode = #tpu.pipeline_mode<synchronous>, transform_indices = @transform_1, window_bounds = array<i64: 32, 128>}, {pipeline_mode = #tpu.pipeline_mode<synchronous>, transform_indices = @transform_2, window_bounds = array<i64: 392, 128>}]} {
    %c0 = arith.constant 0 : index
    %c0_0 = arith.constant 0 : index
    %0 = vector.load %arg1[%c0, %c0_0] : memref<392x32xbf16, #tpu.memory_space<vmem>>, vector<392x32xbf16>
    %c0_1 = arith.constant 0 : index
    %c0_2 = arith.constant 0 : index
    %1 = vector.load %arg2[%c0_1, %c0_2] : memref<32x128xbf16, #tpu.memory_space<vmem>>, vector<32x128xbf16>
    %cst = arith.constant dense<0.000000e+00> : vector<392x128xf32>
    %2 = tpu.matmul %0, %1, %cst {dimension_numbers = #tpu.dot_dimension_numbers<[1], [0], [0], [1], [0, 0, 1, 1], [], []>} : vector<392x32xbf16>, vector<32x128xbf16>, vector<392x128xf32> -> vector<392x128xf32>
    %cst_3 = arith.constant dense<0.000000e+00> : vector<128xf32>
    %3 = vector.multi_reduction <add>, %2, %cst_3 [0] : vector<392x128xf32> to vector<128xf32>
    %4 = vector.shape_cast %3 : vector<128xf32> to vector<1x128xf32>
    %5 = arith.mulf %2, %2 : vector<392x128xf32>
    %cst_4 = arith.constant dense<0.000000e+00> : vector<128xf32>
    %6 = vector.multi_reduction <add>, %5, %cst_4 [0] : vector<392x128xf32> to vector<128xf32>
    %7 = vector.shape_cast %6 : vector<128xf32> to vector<1x128xf32>
    %cst_5 = arith.constant 0.00255102036 : f32
    %8 = vector.broadcast %cst_5 : f32 to vector<1x128xf32>
    %9 = arith.mulf %4, %8 : vector<1x128xf32>
    %10 = arith.mulf %4, %9 : vector<1x128xf32>
    %11 = arith.subf %7, %10 : vector<1x128xf32>
    %cst_6 = arith.constant 0.00255754474 : f32
    %12 = vector.broadcast %cst_6 : f32 to vector<1x128xf32>
    %13 = arith.mulf %11, %12 : vector<1x128xf32>
    %cst_7 = arith.constant 0.000000e+00 : f32
    %14 = vector.broadcast %cst_7 : f32 to vector<1x128xf32>
    %15 = arith.maximumf %13, %14 : vector<1x128xf32>
    %16 = math.sqrt %15 : vector<1x128xf32>
    %cst_8 = arith.constant 1.000000e-03 : f32
    %17 = vector.broadcast %cst_8 : f32 to vector<1x128xf32>
    %18 = arith.addf %16, %17 : vector<1x128xf32>
    %cst_9 = arith.constant 1.000000e+00 : f32
    %19 = vector.broadcast %cst_9 : f32 to vector<1x128xf32>
    %20 = arith.divf %19, %18 : vector<1x128xf32>
    %21 = vector.broadcast %9 : vector<1x128xf32> to vector<392x128xf32>
    %22 = arith.subf %2, %21 : vector<392x128xf32>
    %23 = vector.broadcast %20 : vector<1x128xf32> to vector<392x128xf32>
    %24 = arith.mulf %22, %23 : vector<392x128xf32>
    %c0_10 = arith.constant 0 : index
    %c0_11 = arith.constant 0 : index
    %25 = vector.load %arg3[%c0_10, %c0_11] : memref<392x128xf32, #tpu.memory_space<vmem>>, vector<392x128xf32>
    tpu.vector_store %arg3[%c0_10, %c0_11], %24 {strides = array<i32>} : memref<392x128xf32, #tpu.memory_space<vmem>>, vector<392x128xf32>,
    return
  }
  func.func @transform_0(%arg0: i32) -> (i32, i32) {
    %c0_i32 = arith.constant 0 : i32
    %c0_i32_0 = arith.constant 0 : i32
    %c0_i32_1 = arith.constant 0 : i32
    return %c0_i32, %c0_i32_0 : i32, i32
  }
  func.func @transform_1(%arg0: i32) -> (i32, i32) {
    %c0_i32 = arith.constant 0 : i32
    %c0_i32_0 = arith.constant 0 : i32
    %c0_i32_1 = arith.constant 0 : i32
    return %c0_i32, %c0_i32_0 : i32, i32
  }
  func.func @transform_2(%arg0: i32) -> (i32, i32) {
    %c0_i32 = arith.constant 0 : i32
    %c0_i32_0 = arith.constant 0 : i32
    %c0_i32_1 = arith.constant 0 : i32
    return %c0_i32, %c0_i32_0 : i32, i32
  }
}

</mosaic_0001>

<llo_original>
// kernel: fused_conv_bn.1
$region0: #{fused_conv_bn.1}
  #allocation0 [shape = 'u32[]', space=smem, size = 0x4, offset = 0x4, fixed_abs, tag = 'smem constant byte address 0x4 - core index']
  #allocation1 [shape = 'u32[144,128]{1,0:T(1,128)}', space=vmem, size = 0x12000, scoped, tag = 'internal scratch']
  %s0 = inlined_call_operand.vmem [shape: bf16[392,32], index: 0, kind: input, shape index: {}]
  %s1 = inlined_call_operand.vmem [shape: bf16[32,128], index: 1, kind: input, shape index: {}]
  %s2 = inlined_call_operand.vmem [shape: f32[392,128], index: 2, kind: output, shape index: {}]
  %s3 = sld [smem:[#allocation0]]
  $region18: #{fused_conv_bn.1} parent=0
    _
  %s5 = ssub.s32 1, %s3
  %s6 = scalar_select 0, %s5, %s3
  // Predicated region
  $region2: #{fused_conv_bn.1} parent=0 // pred_check
    _
  $region3: #{fused_conv_bn.1} parent=0 // pred_check_branch
    %8 = sbr.rel (0) target = $region5
  $region4: #{fused_conv_bn.1} parent=0 // pred_region
    _
  $region5: #{fused_conv_bn.1} parent=0 // pred_fallthru
    _
  // Predicated region
  $region6: #{fused_conv_bn.1} parent=0 // pred_check
    _
  $region7: #{fused_conv_bn.1} parent=0 // pred_check_branch
    %10 = sbr.rel (0) target = $region9
  $region8: #{fused_conv_bn.1} parent=0 // pred_region
    _
  $region9: #{fused_conv_bn.1} parent=0 // pred_fallthru
    _
  %v12 = vld [vmem:[%s0] sm:$0xf]
  %v13 = vld [vmem:[%s0 + $0x4] sm:$0xf]
  %v14 = vld [vmem:[%s0 + $0x8] sm:$0xf]
  %v15 = vld [vmem:[%s0 + $0xc] sm:$0xf]
  %v16 = vld [vmem:[%s0 + $0x10] sm:$0xf]
  %v17 = vld [vmem:[%s0 + $0x14] sm:$0xf]
  %v18 = vld [vmem:[%s0 + $0x18] sm:$0xf]
  %v19 = vld [vmem:[%s0 + $0x1c] sm:$0xf]
  %v20 = vld [vmem:[%s0 + $0x20] sm:$0xf]
  %v21 = vld [vmem:[%s0 + $0x24] sm:$0xf]
  %v22 = vld [vmem:[%s0 + $0x28] sm:$0xf]
  %v23 = vld [vmem:[%s0 + $0x2c] sm:$0xf]
  %v24 = vld [vmem:[%s0 + $0x30] sm:$0xf]
  %v25 = vld [vmem:[%s0 + $0x34] sm:$0xf]
  %v26 = vld [vmem:[%s0 + $0x38] sm:$0xf]
  %v27 = vld [vmem:[%s0 + $0x3c] sm:$0xf]
  %v28 = vld [vmem:[%s0 + $0x40] sm:$0xf]
  %v29 = vld [vmem:[%s0 + $0x44] sm:$0xf]
  %v30 = vld [vmem:[%s0 + $0x48] sm:$0xf]
  %v31 = vld [vmem:[%s0 + $0x4c] sm:$0xf]
  %v32 = vld [vmem:[%s0 + $0x50] sm:$0xf]
  %v33 = vld [vmem:[%s0 + $0x54] sm:$0xf]
  %v34 = vld [vmem:[%s0 + $0x58] sm:$0xf]
  %v35 = vld [vmem:[%s0 + $0x5c] sm:$0xf]
  %v36 = vld [vmem:[%s0 + $0x60] sm:$0xf]
  %v37 = vld [vmem:[%s0 + $0x64] sm:$0xf]
  %v38 = vld [vmem:[%s0 + $0x68] sm:$0xf]
  %v39 = vld [vmem:[%s0 + $0x6c] sm:$0xf]
  %v40 = vld [vmem:[%s0 + $0x70] sm:$0xf]
  %v41 = vld [vmem:[%s0 + $0x74] sm:$0xf]
  %v42 = vld [vmem:[%s0 + $0x78] sm:$0xf]
  %v43 = vld [vmem:[%s0 + $0x7c] sm:$0xf]
  %v44 = vld [vmem:[%s0 + $0x80] sm:$0xf]
  %v45 = vld [vmem:[%s0 + $0x84] sm:$0xf]
  %v46 = vld [vmem:[%s0 + $0x88] sm:$0xf]
  %v47 = vld [vmem:[%s0 + $0x8c] sm:$0xf]
  %v48 = vld [vmem:[%s0 + $0x90] sm:$0xf]
  %v49 = vld [vmem:[%s0 + $0x94] sm:$0xf]
  %v50 = vld [vmem:[%s0 + $0x98] sm:$0xf]
  %v51 = vld [vmem:[%s0 + $0x9c] sm:$0xf]
  %v52 = vld [vmem:[%s0 + $0xa0] sm:$0xf]
  %v53 = vld [vmem:[%s0 + $0xa4] sm:$0xf]
  %v54 = vld [vmem:[%s0 + $0xa8] sm:$0xf]
  %v55 = vld [vmem:[%s0 + $0xac] sm:$0xf]
  %v56 = vld [vmem:[%s0 + $0xb0] sm:$0xf]
  %v57 = vld [vmem:[%s0 + $0xb4] sm:$0xf]
  %v58 = vld [vmem:[%s0 + $0xb8] sm:$0xf]
  %v59 = vld [vmem:[%s0 + $0xbc] sm:$0xf]
  %v60 = vld [vmem:[%s0 + $0xc0] sm:$0xf]
  %v61 = vld [vmem:[%s1] sm:$0xf]
  %v62 = vld [vmem:[%s1 + $0x4] sm:$0xf]
  %v63 = vld [vmem:[%s1 + $0x8] sm:$0xf]
  %v64 = vld [vmem:[%s1 + $0xc] sm:$0xf]
  %v114 = vunpack.c.l.b16 %v12
  %v115 = vunpack.c.l.b16 %v13
  %v116 = vunpack.c.l.b16 %v14
  %v117 = vunpack.c.l.b16 %v15
  %v118 = vunpack.c.l.b16 %v16
  %v119 = vunpack.c.l.b16 %v17
  %v120 = vunpack.c.l.b16 %v18
  %v121 = vunpack.c.l.b16 %v19
  %v122 = vunpack.c.l.b16 %v20
  %v123 = vunpack.c.l.b16 %v21
  %v124 = vunpack.c.l.b16 %v22
  %v125 = vunpack.c.l.b16 %v23
  %v126 = vunpack.c.l.b16 %v24
  %v127 = vunpack.c.l.b16 %v25
  %v128 = vunpack.c.l.b16 %v26
  %v129 = vunpack.c.l.b16 %v27
  %v130 = vunpack.c.l.b16 %v28
  %v131 = vunpack.c.l.b16 %v29
  %v132 = vunpack.c.l.b16 %v30
  %v133 = vunpack.c.l.b16 %v31
  %v134 = vunpack.c.l.b16 %v32
  %v135 = vunpack.c.l.b16 %v33
  %v136 = vunpack.c.l.b16 %v34
  %v137 = vunpack.c.l.b16 %v35
  %v138 = vunpack.c.l.b16 %v36
  %v139 = vunpack.c.l.b16 %v37
  %v140 = vunpack.c.l.b16 %v38
  %v141 = vunpack.c.l.b16 %v39
  %v142 = vunpack.c.l.b16 %v40
  %v143 = vunpack.c.l.b16 %v41
  %v144 = vunpack.c.l.b16 %v42
  %v145 = vunpack.c.l.b16 %v43
  %v146 = vunpack.c.l.b16 %v44
  %v147 = vunpack.c.l.b16 %v45
  %v148 = vunpack.c.l.b16 %v46
  %v149 = vunpack.c.l.b16 %v47
  %v150 = vunpack.c.l.b16 %v48
  %v151 = vunpack.c.l.b16 %v49
  %v152 = vunpack.c.l.b16 %v50
  %v153 = vunpack.c.l.b16 %v51
  %v154 = vunpack.c.l.b16 %v52
  %v155 = vunpack.c.l.b16 %v53
  %v156 = vunpack.c.l.b16 %v54
  %v157 = vunpack.c.l.b16 %v55
  %v158 = vunpack.c.l.b16 %v56
  %v159 = vunpack.c.l.b16 %v57
  %v160 = vunpack.c.l.b16 %v58
  %v161 = vunpack.c.l.b16 %v59
  %v162 = vunpack.c.l.b16 %v60
  %v163 = vpack.c.b16 %v115, %v114
  %v164 = vpack.c.b16 %v117, %v116
  %v165 = vpack.c.b16 %v119, %v118
  %v166 = vpack.c.b16 %v121, %v120
  %v167 = vpack.c.b16 %v123, %v122
  %v168 = vpack.c.b16 %v125, %v124
  %v169 = vpack.c.b16 %v127, %v126
  %v170 = vpack.c.b16 %v129, %v128
  %v171 = vpack.c.b16 %v131, %v130
  %v172 = vpack.c.b16 %v133, %v132
  %v173 = vpack.c.b16 %v135, %v134
  %v174 = vpack.c.b16 %v137, %v136
  %v175 = vpack.c.b16 %v139, %v138
  %v176 = vpack.c.b16 %v141, %v140
  %v177 = vpack.c.b16 %v143, %v142
  %v178 = vpack.c.b16 %v145, %v144
  %v179 = vpack.c.b16 %v147, %v146
  %v180 = vpack.c.b16 %v149, %v148
  %v181 = vpack.c.b16 %v151, %v150
  %v182 = vpack.c.b16 %v153, %v152
  %v183 = vpack.c.b16 %v155, %v154
  %v184 = vpack.c.b16 %v157, %v156
  %v185 = vpack.c.b16 %v159, %v158
  %v186 = vpack.c.b16 %v161, %v160
  %v187 = vpack.c.b16 %v162, %v162
  %v192 = vunpack.c.l.b16 %v61
  %v193 = vunpack.c.l.b16 %v62
  %v194 = vunpack.c.l.b16 %v63
  %v195 = vunpack.c.l.b16 %v64
  %v196 = vpack.c.b16 %v193, %v192
  %v197 = vpack.c.b16 %v195, %v194
  %vm200 = vcmask 261120
  %v202 = vsel %vm200, %v163, 0
  %v205 = vsel %vm200, %v164, 0
  %v208 = vsel %vm200, %v165, 0
  %v211 = vsel %vm200, %v166, 0
  %v214 = vsel %vm200, %v167, 0
  %v217 = vsel %vm200, %v168, 0
  %v220 = vsel %vm200, %v169, 0
  %v223 = vsel %vm200, %v170, 0
  %v226 = vsel %vm200, %v171, 0
  %v229 = vsel %vm200, %v172, 0
  %v232 = vsel %vm200, %v173, 0
  %v235 = vsel %vm200, %v174, 0
  %v238 = vsel %vm200, %v175, 0
  %v241 = vsel %vm200, %v176, 0
  %v244 = vsel %vm200, %v177, 0
  %v247 = vsel %vm200, %v178, 0
  %v250 = vsel %vm200, %v179, 0
  %v253 = vsel %vm200, %v180, 0
  %v256 = vsel %vm200, %v181, 0
  %v259 = vsel %vm200, %v182, 0
  %v262 = vsel %vm200, %v183, 0
  %v265 = vsel %vm200, %v184, 0
  %v268 = vsel %vm200, %v185, 0
  %v271 = vsel %vm200, %v186, 0
  %v274 = vsel %vm200, %v187, 0
  %276 = vmatprep.subr.bf16.mxu0 0
  %277 = vmatpush1.bf16.msra.mxu0 0
  %278 = vmatprep.subr.bf16.mxu0 0
  %279 = vmatpush1.bf16.msra.mxu0 0
  %280 = vmatprep.subr.bf16.mxu0 0
  %281 = vmatpush1.bf16.msra.mxu0 0
  %282 = vmatprep.subr.bf16.mxu0 0
  %283 = vmatpush1.bf16.msra.mxu0 0
  %284 = vmatprep.subr.bf16.mxu0 0
  %285 = vmatpush1.bf16.msra.mxu0 0
  %286 = vmatprep.subr.bf16.mxu0 0
  %287 = vmatpush1.bf16.msra.mxu0 0
  %288 = vmatprep.subr.bf16.mxu0 0
  %289 = vmatpush1.bf16.msra.mxu0 %v197
  %290 = vmatprep.subr.bf16.mxu0 0
  %291 = vmatpush1.bf16.msra.mxu0 %v196
  %292 = vmatprep.subr.bf16.mxu0 0
  %293 = vmatpush2.bf16.msra.mxu0 0
  %294 = vmatprep.subr.bf16.mxu0 0
  %295 = vmatpush2.bf16.msra.mxu0 0
  %296 = vmatprep.subr.bf16.mxu0 0
  %297 = vmatpush2.bf16.msra.mxu0 0
  %298 = vmatprep.subr.bf16.mxu0 0
  %299 = vmatpush2.bf16.msra.mxu0 0
  %300 = vmatprep.subr.bf16.mxu0 0
  %301 = vmatpush2.bf16.msra.mxu0 0
  %302 = vmatprep.subr.bf16.mxu0 0
  %303 = vmatpush2.bf16.msra.mxu0 0
  %304 = vmatprep.subr.bf16.mxu0 0
  %305 = vmatpush2.bf16.msra.mxu0 0
  %306 = vmatprep.subr.bf16.mxu0 0
  %307 = vmatpush2.bf16.msra.mxu0 0
  %308 = vmatprep.mubr.bf16.mxu0 0
  %309 = vmatmul.mubr.bf16.gmra.mxu0 %v202
  %v310 = vpop.f32.mrf.mxu0
  %v311 = vadd.f32 0.0, %v310
  %v312 = vpop.f32.mrf.mxu0
  %v313 = vpop.f32.mrf.mxu0
  %v314 = vadd.f32 0.0, %v313
  %v315 = vpop.f32.mrf.mxu0
  %316 = vmatprep.mubr.bf16.mxu0 0
  %317 = vmatmul.mubr.bf16.gmra.mxu0 %v205
  %v318 = vpop.f32.mrf.mxu0
  %v319 = vadd.f32 0.0, %v318
  %v320 = vpop.f32.mrf.mxu0
  %v321 = vpop.f32.mrf.mxu0
  %v322 = vadd.f32 0.0, %v321
  %v323 = vpop.f32.mrf.mxu0
  %324 = vmatprep.mubr.bf16.mxu0 0
  %325 = vmatmul.mubr.bf16.gmra.mxu0 %v208
  %v326 = vpop.f32.mrf.mxu0
  %v327 = vadd.f32 0.0, %v326
  %v328 = vpop.f32.mrf.mxu0
  %v329 = vpop.f32.mrf.mxu0
  %v330 = vadd.f32 0.0, %v329
  %v331 = vpop.f32.mrf.mxu0
  %332 = vmatprep.mubr.bf16.mxu0 0
  %333 = vmatmul.mubr.bf16.gmra.mxu0 %v211
  %v334 = vpop.f32.mrf.mxu0
  %v335 = vadd.f32 0.0, %v334
  %v336 = vpop.f32.mrf.mxu0
  %v337 = vpop.f32.mrf.mxu0
  %v338 = vadd.f32 0.0, %v337
  %v339 = vpop.f32.mrf.mxu0
  %340 = vmatprep.mubr.bf16.mxu0 0
  %341 = vmatmul.mubr.bf16.gmra.mxu0 %v214
  %v342 = vpop.f32.mrf.mxu0
  %v343 = vadd.f32 0.0, %v342
  %v344 = vpop.f32.mrf.mxu0
  %v345 = vpop.f32.mrf.mxu0
  %v346 = vadd.f32 0.0, %v345
  %v347 = vpop.f32.mrf.mxu0
  %348 = vmatprep.mubr.bf16.mxu0 0
  %349 = vmatmul.mubr.bf16.gmra.mxu0 %v217
  %v350 = vpop.f32.mrf.mxu0
  %v351 = vadd.f32 0.0, %v350
  %v352 = vpop.f32.mrf.mxu0
  %v353 = vpop.f32.mrf.mxu0
  %v354 = vadd.f32 0.0, %v353
  %v355 = vpop.f32.mrf.mxu0
  %356 = vmatprep.mubr.bf16.mxu0 0
  %357 = vmatmul.mubr.bf16.gmra.mxu0 %v220
  %v358 = vpop.f32.mrf.mxu0
  %v359 = vadd.f32 0.0, %v358
  %v360 = vpop.f32.mrf.mxu0
  %v361 = vpop.f32.mrf.mxu0
  %v362 = vadd.f32 0.0, %v361
  %v363 = vpop.f32.mrf.mxu0
  %364 = vmatprep.mubr.bf16.mxu0 0
  %365 = vmatmul.mubr.bf16.gmra.mxu0 %v223
  %v366 = vpop.f32.mrf.mxu0
  %v367 = vadd.f32 0.0, %v366
  %v368 = vpop.f32.mrf.mxu0
  %v369 = vpop.f32.mrf.mxu0
  %v370 = vadd.f32 0.0, %v369
  %v371 = vpop.f32.mrf.mxu0
  %372 = vmatprep.mubr.bf16.mxu0 0
  %373 = vmatmul.mubr.bf16.gmra.mxu0 %v226
  %v374 = vpop.f32.mrf.mxu0
  %v375 = vadd.f32 0.0, %v374
  %v376 = vpop.f32.mrf.mxu0
  %v377 = vpop.f32.mrf.mxu0
  %v378 = vadd.f32 0.0, %v377
  %v379 = vpop.f32.mrf.mxu0
  %380 = vmatprep.mubr.bf16.mxu0 0
  %381 = vmatmul.mubr.bf16.gmra.mxu0 %v229
  %v382 = vpop.f32.mrf.mxu0
  %v383 = vadd.f32 0.0, %v382
  %v384 = vpop.f32.mrf.mxu0
  %v385 = vpop.f32.mrf.mxu0
  %v386 = vadd.f32 0.0, %v385
  %v387 = vpop.f32.mrf.mxu0
  %388 = vmatprep.mubr.bf16.mxu0 0
  %389 = vmatmul.mubr.bf16.gmra.mxu0 %v232
  %v390 = vpop.f32.mrf.mxu0
  %v391 = vadd.f32 0.0, %v390
  %v392 = vpop.f32.mrf.mxu0
  %v393 = vpop.f32.mrf.mxu0
  %v394 = vadd.f32 0.0, %v393
  %v395 = vpop.f32.mrf.mxu0
  %396 = vmatprep.mubr.bf16.mxu0 0
  %397 = vmatmul.mubr.bf16.gmra.mxu0 %v235
  %v398 = vpop.f32.mrf.mxu0
  %v399 = vadd.f32 0.0, %v398
  %v400 = vpop.f32.mrf.mxu0
  %v401 = vpop.f32.mrf.mxu0
  %v402 = vadd.f32 0.0, %v401
  %v403 = vpop.f32.mrf.mxu0
  %404 = vmatprep.mubr.bf16.mxu0 0
  %405 = vmatmul.mubr.bf16.gmra.mxu0 %v238
  %v406 = vpop.f32.mrf.mxu0
  %v407 = vadd.f32 0.0, %v406
  %v408 = vpop.f32.mrf.mxu0
  %v409 = vpop.f32.mrf.mxu0
  %v410 = vadd.f32 0.0, %v409
  %v411 = vpop.f32.mrf.mxu0
  %412 = vmatprep.mubr.bf16.mxu0 0
  %413 = vmatmul.mubr.bf16.gmra.mxu0 %v241
  %v414 = vpop.f32.mrf.mxu0
  %v415 = vadd.f32 0.0, %v414
  %v416 = vpop.f32.mrf.mxu0
  %v417 = vpop.f32.mrf.mxu0
  %v418 = vadd.f32 0.0, %v417
  %v419 = vpop.f32.mrf.mxu0
  %420 = vmatprep.mubr.bf16.mxu0 0
  %421 = vmatmul.mubr.bf16.gmra.mxu0 %v244
  %v422 = vpop.f32.mrf.mxu0
  %v423 = vadd.f32 0.0, %v422
  %v424 = vpop.f32.mrf.mxu0
  %v425 = vpop.f32.mrf.mxu0
  %v426 = vadd.f32 0.0, %v425
  %v427 = vpop.f32.mrf.mxu0
  %428 = vmatprep.mubr.bf16.mxu0 0
  %429 = vmatmul.mubr.bf16.gmra.mxu0 %v247
  %v430 = vpop.f32.mrf.mxu0
  %v431 = vadd.f32 0.0, %v430
  %v432 = vpop.f32.mrf.mxu0
  %v433 = vpop.f32.mrf.mxu0
  %v434 = vadd.f32 0.0, %v433
  %v435 = vpop.f32.mrf.mxu0
  %436 = vmatprep.mubr.bf16.mxu0 0
  %437 = vmatmul.mubr.bf16.gmra.mxu0 %v250
  %v438 = vpop.f32.mrf.mxu0
  %v439 = vadd.f32 0.0, %v438
  %v440 = vpop.f32.mrf.mxu0
  %v441 = vpop.f32.mrf.mxu0
  %v442 = vadd.f32 0.0, %v441
  %v443 = vpop.f32.mrf.mxu0
  %444 = vmatprep.mubr.bf16.mxu0 0
  %445 = vmatmul.mubr.bf16.gmra.mxu0 %v253
  %v446 = vpop.f32.mrf.mxu0
  %v447 = vadd.f32 0.0, %v446
  %v448 = vpop.f32.mrf.mxu0
  %v449 = vpop.f32.mrf.mxu0
  %v450 = vadd.f32 0.0, %v449
  %v451 = vpop.f32.mrf.mxu0
  %452 = vmatprep.mubr.bf16.mxu0 0
  %453 = vmatmul.mubr.bf16.gmra.mxu0 %v256
  %v454 = vpop.f32.mrf.mxu0
  %v455 = vadd.f32 0.0, %v454
  %v456 = vpop.f32.mrf.mxu0
  %v457 = vpop.f32.mrf.mxu0
  %v458 = vadd.f32 0.0, %v457
  %v459 = vpop.f32.mrf.mxu0
  %460 = vmatprep.mubr.bf16.mxu0 0
  %461 = vmatmul.mubr.bf16.gmra.mxu0 %v259
  %v462 = vpop.f32.mrf.mxu0
  %v463 = vadd.f32 0.0, %v462
  %v464 = vpop.f32.mrf.mxu0
  %v465 = vpop.f32.mrf.mxu0
  %v466 = vadd.f32 0.0, %v465
  %v467 = vpop.f32.mrf.mxu0
  %468 = vmatprep.mubr.bf16.mxu0 0
  %469 = vmatmul.mubr.bf16.gmra.mxu0 %v262
  %v470 = vpop.f32.mrf.mxu0
  %v471 = vadd.f32 0.0, %v470
  %v472 = vpop.f32.mrf.mxu0
  %v473 = vpop.f32.mrf.mxu0
  %v474 = vadd.f32 0.0, %v473
  %v475 = vpop.f32.mrf.mxu0
  %476 = vmatprep.mubr.bf16.mxu0 0
  %477 = vmatmul.mubr.bf16.gmra.mxu0 %v265
  %v478 = vpop.f32.mrf.mxu0
  %v479 = vadd.f32 0.0, %v478
  %v480 = vpop.f32.mrf.mxu0
  %v481 = vpop.f32.mrf.mxu0
  %v482 = vadd.f32 0.0, %v481
  %v483 = vpop.f32.mrf.mxu0
  %484 = vmatprep.mubr.bf16.mxu0 0
  %485 = vmatmul.mubr.bf16.gmra.mxu0 %v268
  %v486 = vpop.f32.mrf.mxu0
  %v487 = vadd.f32 0.0, %v486
  %v488 = vpop.f32.mrf.mxu0
  %v489 = vpop.f32.mrf.mxu0
  %v490 = vadd.f32 0.0, %v489
  %v491 = vpop.f32.mrf.mxu0
  %492 = vmatprep.mubr.bf16.mxu0 0
  %493 = vmatmul.mubr.bf16.gmra.mxu0 %v271
  %v494 = vpop.f32.mrf.mxu0
  %v495 = vadd.f32 0.0, %v494
  %v496 = vpop.f32.mrf.mxu0
  %v497 = vpop.f32.mrf.mxu0
  %v498 = vadd.f32 0.0, %v497
  %v499 = vpop.f32.mrf.mxu0
  %500 = vmatprep.mubr.bf16.mxu0 0
  %501 = vmatmul.mubr.bf16.gmra.mxu0 %v274
  %v502 = vpop.f32.mrf.mxu0
  %v503 = vadd.f32 0.0, %v502
  %v504 = vpop.f32.mrf.mxu0
  %v505 = vpop.f32.mrf.mxu0
  %v506 = vpop.f32.mrf.mxu0
  %507 = vdwg.mxu0
  %v508 = vadd.f32 %v311, %v314
  %v509 = vadd.f32 %v508, %v319
  %v510 = vadd.f32 %v509, %v322
  %v511 = vadd.f32 %v510, %v327
  %v512 = vadd.f32 %v511, %v330
  %v513 = vadd.f32 %v512, %v335
  %v514 = vadd.f32 %v513, %v338
  %v515 = vadd.f32 %v514, %v343
  %v516 = vadd.f32 %v515, %v346
  %v517 = vadd.f32 %v516, %v351
  %v518 = vadd.f32 %v517, %v354
  %v519 = vadd.f32 %v518, %v359
  %v520 = vadd.f32 %v519, %v362
  %v521 = vadd.f32 %v520, %v367
  %v522 = vadd.f32 %v521, %v370
  %v523 = vadd.f32 %v522, %v375
  %v524 = vadd.f32 %v523, %v378
  %v525 = vadd.f32 %v524, %v383
  %v526 = vadd.f32 %v525, %v386
  %v527 = vadd.f32 %v526, %v391
  %v528 = vadd.f32 %v527, %v394
  %v529 = vadd.f32 %v528, %v399
  %v530 = vadd.f32 %v529, %v402
  %v531 = vadd.f32 %v530, %v407
  %v532 = vadd.f32 %v531, %v410
  %v533 = vadd.f32 %v532, %v415
  %v534 = vadd.f32 %v533, %v418
  %v535 = vadd.f32 %v534, %v423
  %v536 = vadd.f32 %v535, %v426
  %v537 = vadd.f32 %v536, %v431
  %v538 = vadd.f32 %v537, %v434
  %v539 = vadd.f32 %v538, %v439
  %v540 = vadd.f32 %v539, %v442
  %v541 = vadd.f32 %v540, %v447
  %v542 = vadd.f32 %v541, %v450
  %v543 = vadd.f32 %v542, %v455
  %v544 = vadd.f32 %v543, %v458
  %v545 = vadd.f32 %v544, %v463
  %v546 = vadd.f32 %v545, %v466
  %v547 = vadd.f32 %v546, %v471
  %v548 = vadd.f32 %v547, %v474
  %v549 = vadd.f32 %v548, %v479
  %v550 = vadd.f32 %v549, %v482
  %v551 = vadd.f32 %v550, %v487
  %v552 = vadd.f32 %v551, %v490
  %v553 = vadd.f32 %v552, %v495
  %v554 = vadd.f32 %v553, %v498
  %v555 = vadd.f32 %v554, %v503
  %v556 = vrot.slane %v555, 4
  %v557 = vadd.f32 %v555, %v556
  %v558 = vrot.slane %v557, 2
  %v559 = vadd.f32 %v557, %v558
  %v560 = vrot.slane %v559, 1
  %v561 = vadd.f32 %v559, %v560
  %v562 = vmul.f32 %v311, %v311
  %v563 = vmul.f32 %v314, %v314
  %v564 = vmul.f32 %v319, %v319
  %v565 = vmul.f32 %v322, %v322
  %v566 = vmul.f32 %v327, %v327
  %v567 = vmul.f32 %v330, %v330
  %v568 = vmul.f32 %v335, %v335
  %v569 = vmul.f32 %v338, %v338
  %v570 = vmul.f32 %v343, %v343
  %v571 = vmul.f32 %v346, %v346
  %v572 = vmul.f32 %v351, %v351
  %v573 = vmul.f32 %v354, %v354
  %v574 = vmul.f32 %v359, %v359
  %v575 = vmul.f32 %v362, %v362
  %v576 = vmul.f32 %v367, %v367
  %v577 = vmul.f32 %v370, %v370
  %v578 = vmul.f32 %v375, %v375
  %v579 = vmul.f32 %v378, %v378
  %v580 = vmul.f32 %v383, %v383
  %v581 = vmul.f32 %v386, %v386
  %v582 = vmul.f32 %v391, %v391
  %v583 = vmul.f32 %v394, %v394
  %v584 = vmul.f32 %v399, %v399
  %v585 = vmul.f32 %v402, %v402
  %v586 = vmul.f32 %v407, %v407
  %v587 = vmul.f32 %v410, %v410
  %v588 = vmul.f32 %v415, %v415
  %v589 = vmul.f32 %v418, %v418
  %v590 = vmul.f32 %v423, %v423
  %v591 = vmul.f32 %v426, %v426
  %v592 = vmul.f32 %v431, %v431
  %v593 = vmul.f32 %v434, %v434
  %v594 = vmul.f32 %v439, %v439
  %v595 = vmul.f32 %v442, %v442
  %v596 = vmul.f32 %v447, %v447
  %v597 = vmul.f32 %v450, %v450
  %v598 = vmul.f32 %v455, %v455
  %v599 = vmul.f32 %v458, %v458
  %v600 = vmul.f32 %v463, %v463
  %v601 = vmul.f32 %v466, %v466
  %v602 = vmul.f32 %v471, %v471
  %v603 = vmul.f32 %v474, %v474
  %v604 = vmul.f32 %v479, %v479
  %v605 = vmul.f32 %v482, %v482
  %v606 = vmul.f32 %v487, %v487
  %v607 = vmul.f32 %v490, %v490
  %v608 = vmul.f32 %v495, %v495
  %v609 = vmul.f32 %v498, %v498
  %v610 = vmul.f32 %v503, %v503
  %v611 = vadd.f32 %v562, %v563
  %v612 = vadd.f32 %v611, %v564
  %v613 = vadd.f32 %v612, %v565
  %v614 = vadd.f32 %v613, %v566
  %v615 = vadd.f32 %v614, %v567
  %v616 = vadd.f32 %v615, %v568
  %v617 = vadd.f32 %v616, %v569
  %v618 = vadd.f32 %v617, %v570
  %v619 = vadd.f32 %v618, %v571
  %v620 = vadd.f32 %v619, %v572
  %v621 = vadd.f32 %v620, %v573
  %v622 = vadd.f32 %v621, %v574
  %v623 = vadd.f32 %v622, %v575
  %v624 = vadd.f32 %v623, %v576
  %v625 = vadd.f32 %v624, %v577
  %v626 = vadd.f32 %v625, %v578
  %v627 = vadd.f32 %v626, %v579
  %v628 = vadd.f32 %v627, %v580
  %v629 = vadd.f32 %v628, %v581
  %v630 = vadd.f32 %v629, %v582
  %v631 = vadd.f32 %v630, %v583
  %v632 = vadd.f32 %v631, %v584
  %v633 = vadd.f32 %v632, %v585
  %v634 = vadd.f32 %v633, %v586
  %v635 = vadd.f32 %v634, %v587
  %v636 = vadd.f32 %v635, %v588
  %v637 = vadd.f32 %v636, %v589
  %v638 = vadd.f32 %v637, %v590
  %v639 = vadd.f32 %v638, %v591
  %v640 = vadd.f32 %v639, %v592
  %v641 = vadd.f32 %v640, %v593
  %v642 = vadd.f32 %v641, %v594
  %v643 = vadd.f32 %v642, %v595
  %v644 = vadd.f32 %v643, %v596
  %v645 = vadd.f32 %v644, %v597
  %v646 = vadd.f32 %v645, %v598
  %v647 = vadd.f32 %v646, %v599
  %v648 = vadd.f32 %v647, %v600
  %v649 = vadd.f32 %v648, %v601
  %v650 = vadd.f32 %v649, %v602
  %v651 = vadd.f32 %v650, %v603
  %v652 = vadd.f32 %v651, %v604
  %v653 = vadd.f32 %v652, %v605
  %v654 = vadd.f32 %v653, %v606
  %v655 = vadd.f32 %v654, %v607
  %v656 = vadd.f32 %v655, %v608
  %v657 = vadd.f32 %v656, %v609
  %v658 = vadd.f32 %v657, %v610
  %v659 = vrot.slane %v658, 4
  %v660 = vadd.f32 %v658, %v659
  %v661 = vrot.slane %v660, 2
  %v662 = vadd.f32 %v660, %v661
  %v663 = vrot.slane %v662, 1
  %v664 = vadd.f32 %v662, %v663
  %v665 = vmul.f32 %v561, 0.0025510204
  %v666 = vmul.f32 %v561, %v665
  %v667 = vsub.f32 %v664, %v666
  %v668 = vmul.f32 %v667, 0.0025575447
  %v669 = vmax.f32 %v668, 0.0
  %v670 = vrsqrt.pop %v669
  %v671 = vmul.f32 %v669, %v670
  %vm672 = vcmp.eq.f32.partialorder %v669, inf
  %v673 = vsel %vm672, %v669, %v671
  %vm674 = vcmp.eq.f32.partialorder %v669, 0.0
  %v675 = vand.u32 %v669, 2147483648
  %v676 = vsel %vm674, %v675, %v673
  %v677 = vadd.f32 %v676, 0.001
  %v678 = vrcp.pop %v677
  %v679 = vmul.f32 1.0, %v678
  %v680 = vsub.f32 %v311, %v665
  %v681 = vsub.f32 %v314, %v665
  %v682 = vsub.f32 %v319, %v665
  %v683 = vsub.f32 %v322, %v665
  %v684 = vsub.f32 %v327, %v665
  %v685 = vsub.f32 %v330, %v665
  %v686 = vsub.f32 %v335, %v665
  %v687 = vsub.f32 %v338, %v665
  %v688 = vsub.f32 %v343, %v665
  %v689 = vsub.f32 %v346, %v665
  %v690 = vsub.f32 %v351, %v665
  %v691 = vsub.f32 %v354, %v665
  %v692 = vsub.f32 %v359, %v665
  %v693 = vsub.f32 %v362, %v665
  %v694 = vsub.f32 %v367, %v665
  %v695 = vsub.f32 %v370, %v665
  %v696 = vsub.f32 %v375, %v665
  %v697 = vsub.f32 %v378, %v665
  %v698 = vsub.f32 %v383, %v665
  %v699 = vsub.f32 %v386, %v665
  %v700 = vsub.f32 %v391, %v665
  %v701 = vsub.f32 %v394, %v665
  %v702 = vsub.f32 %v399, %v665
  %v703 = vsub.f32 %v402, %v665
  %v704 = vsub.f32 %v407, %v665
  %v705 = vsub.f32 %v410, %v665
  %v706 = vsub.f32 %v415, %v665
  %v707 = vsub.f32 %v418, %v665
  %v708 = vsub.f32 %v423, %v665
  %v709 = vsub.f32 %v426, %v665
  %v710 = vsub.f32 %v431, %v665
  %v711 = vsub.f32 %v434, %v665
  %v712 = vsub.f32 %v439, %v665
  %v713 = vsub.f32 %v442, %v665
  %v714 = vsub.f32 %v447, %v665
  %v715 = vsub.f32 %v450, %v665
  %v716 = vsub.f32 %v455, %v665
  %v717 = vsub.f32 %v458, %v665
  %v718 = vsub.f32 %v463, %v665
  %v719 = vsub.f32 %v466, %v665
  %v720 = vsub.f32 %v471, %v665
  %v721 = vsub.f32 %v474, %v665
  %v722 = vsub.f32 %v479, %v665
  %v723 = vsub.f32 %v482, %v665
  %v724 = vsub.f32 %v487, %v665
  %v725 = vsub.f32 %v490, %v665
  %v726 = vsub.f32 %v495, %v665
  %v727 = vsub.f32 %v498, %v665
  %v728 = vsub.f32 %v503, %v665
  %v729 = vmul.f32 %v680, %v679
  %v730 = vmul.f32 %v681, %v679
  %v731 = vmul.f32 %v682, %v679
  %v732 = vmul.f32 %v683, %v679
  %v733 = vmul.f32 %v684, %v679
  %v734 = vmul.f32 %v685, %v679
  %v735 = vmul.f32 %v686, %v679
  %v736 = vmul.f32 %v687, %v679
  %v737 = vmul.f32 %v688, %v679
  %v738 = vmul.f32 %v689, %v679
  %v739 = vmul.f32 %v690, %v679
  %v740 = vmul.f32 %v691, %v679
  %v741 = vmul.f32 %v692, %v679
  %v742 = vmul.f32 %v693, %v679
  %v743 = vmul.f32 %v694, %v679
  %v744 = vmul.f32 %v695, %v679
  %v745 = vmul.f32 %v696, %v679
  %v746 = vmul.f32 %v697, %v679
  %v747 = vmul.f32 %v698, %v679
  %v748 = vmul.f32 %v699, %v679
  %v749 = vmul.f32 %v700, %v679
  %v750 = vmul.f32 %v701, %v679
  %v751 = vmul.f32 %v702, %v679
  %v752 = vmul.f32 %v703, %v679
  %v753 = vmul.f32 %v704, %v679
  %v754 = vmul.f32 %v705, %v679
  %v755 = vmul.f32 %v706, %v679
  %v756 = vmul.f32 %v707, %v679
  %v757 = vmul.f32 %v708, %v679
  %v758 = vmul.f32 %v709, %v679
  %v759 = vmul.f32 %v710, %v679
  %v760 = vmul.f32 %v711, %v679
  %v761 = vmul.f32 %v712, %v679
  %v762 = vmul.f32 %v713, %v679
  %v763 = vmul.f32 %v714, %v679
  %v764 = vmul.f32 %v715, %v679
  %v765 = vmul.f32 %v716, %v679
  %v766 = vmul.f32 %v717, %v679
  %v767 = vmul.f32 %v718, %v679
  %v768 = vmul.f32 %v719, %v679
  %v769 = vmul.f32 %v720, %v679
  %v770 = vmul.f32 %v721, %v679
  %v771 = vmul.f32 %v722, %v679
  %v772 = vmul.f32 %v723, %v679
  %v773 = vmul.f32 %v724, %v679
  %v774 = vmul.f32 %v725, %v679
  %v775 = vmul.f32 %v726, %v679
  %v776 = vmul.f32 %v727, %v679
  %v777 = vmul.f32 %v728, %v679
  %778 = vst [vmem:[%s2] sm:$0xff] %v729
  %779 = vst [vmem:[%s2 + $0x8] sm:$0xff] %v730
  %780 = vst [vmem:[%s2 + $0x10] sm:$0xff] %v731
  %781 = vst [vmem:[%s2 + $0x18] sm:$0xff] %v732
  %782 = vst [vmem:[%s2 + $0x20] sm:$0xff] %v733
  %783 = vst [vmem:[%s2 + $0x28] sm:$0xff] %v734
  %784 = vst [vmem:[%s2 + $0x30] sm:$0xff] %v735
  %785 = vst [vmem:[%s2 + $0x38] sm:$0xff] %v736
  %786 = vst [vmem:[%s2 + $0x40] sm:$0xff] %v737
  %787 = vst [vmem:[%s2 + $0x48] sm:$0xff] %v738
  %788 = vst [vmem:[%s2 + $0x50] sm:$0xff] %v739
  %789 = vst [vmem:[%s2 + $0x58] sm:$0xff] %v740
  %790 = vst [vmem:[%s2 + $0x60] sm:$0xff] %v741
  %791 = vst [vmem:[%s2 + $0x68] sm:$0xff] %v742
  %792 = vst [vmem:[%s2 + $0x70] sm:$0xff] %v743
  %793 = vst [vmem:[%s2 + $0x78] sm:$0xff] %v744
  %794 = vst [vmem:[%s2 + $0x80] sm:$0xff] %v745
  %795 = vst [vmem:[%s2 + $0x88] sm:$0xff] %v746
  %796 = vst [vmem:[%s2 + $0x90] sm:$0xff] %v747
  %797 = vst [vmem:[%s2 + $0x98] sm:$0xff] %v748
  %798 = vst [vmem:[%s2 + $0xa0] sm:$0xff] %v749
  %799 = vst [vmem:[%s2 + $0xa8] sm:$0xff] %v750
  %800 = vst [vmem:[%s2 + $0xb0] sm:$0xff] %v751
  %801 = vst [vmem:[%s2 + $0xb8] sm:$0xff] %v752
  %802 = vst [vmem:[%s2 + $0xc0] sm:$0xff] %v753
  %803 = vst [vmem:[%s2 + $0xc8] sm:$0xff] %v754
  %804 = vst [vmem:[%s2 + $0xd0] sm:$0xff] %v755
  %805 = vst [vmem:[%s2 + $0xd8] sm:$0xff] %v756
  %806 = vst [vmem:[%s2 + $0xe0] sm:$0xff] %v757
  %807 = vst [vmem:[%s2 + $0xe8] sm:$0xff] %v758
  %808 = vst [vmem:[%s2 + $0xf0] sm:$0xff] %v759
  %809 = vst [vmem:[%s2 + $0xf8] sm:$0xff] %v760
  %810 = vst [vmem:[%s2 + $0x100] sm:$0xff] %v761
  %811 = vst [vmem:[%s2 + $0x108] sm:$0xff] %v762
  %812 = vst [vmem:[%s2 + $0x110] sm:$0xff] %v763
  %813 = vst [vmem:[%s2 + $0x118] sm:$0xff] %v764
  %814 = vst [vmem:[%s2 + $0x120] sm:$0xff] %v765
  %815 = vst [vmem:[%s2 + $0x128] sm:$0xff] %v766
  %816 = vst [vmem:[%s2 + $0x130] sm:$0xff] %v767
  %817 = vst [vmem:[%s2 + $0x138] sm:$0xff] %v768
  %818 = vst [vmem:[%s2 + $0x140] sm:$0xff] %v769
  %819 = vst [vmem:[%s2 + $0x148] sm:$0xff] %v770
  %820 = vst [vmem:[%s2 + $0x150] sm:$0xff] %v771
  %821 = vst [vmem:[%s2 + $0x158] sm:$0xff] %v772
  %822 = vst [vmem:[%s2 + $0x160] sm:$0xff] %v773
  %823 = vst [vmem:[%s2 + $0x168] sm:$0xff] %v774
  %824 = vst [vmem:[%s2 + $0x170] sm:$0xff] %v775
  %825 = vst [vmem:[%s2 + $0x178] sm:$0xff] %v776
  %826 = vst [vmem:[%s2 + $0x180] sm:$0xff] %v777
  // Predicated region
  $region10: #{fused_conv_bn.1} parent=0 // pred_check
    _
  $region11: #{fused_conv_bn.1} parent=0 // pred_check_branch
    %828 = sbr.rel (0) target = $region13
  $region12: #{fused_conv_bn.1} parent=0 // pred_region
    _
  $region13: #{fused_conv_bn.1} parent=0 // pred_fallthru
    _
  // Predicated region
  $region14: #{fused_conv_bn.1} parent=0 // pred_check
    _
  $region15: #{fused_conv_bn.1} parent=0 // pred_check_branch
    %830 = sbr.rel (0) target = $region17
  $region16: #{fused_conv_bn.1} parent=0 // pred_region
    _
  $region17: #{fused_conv_bn.1} parent=0 // pred_fallthru
    _

</llo_original>
